<compile_context>
chip_gen: v6e
topology: v6e:2x2x1
jax: 0.10.0
libtpu: 0.0.40
codegen_flags: <defaults>
</compile_context>

<pallas_src>
import functools

import numpy as np

import jax
import jax.numpy as jnp
from jax import lax
from jax.experimental import pallas as pl
from jax.experimental.pallas import tpu as pltpu

EPS_GN = 1e-5  # PyTorch GroupNorm default eps
EPS_LN = 1e-5  # PyTorch LayerNorm default eps


# --------------------------------------------------------------------------- kernels
def _norm_block_kernel_packed(x_ref, ohg_ref, ohgt_s_ref, ohl_ref, ohlt_s_ref, aff_ref, o_ref,
                              *, inv_gs, inv_ls):
    """D < 128: k rows packed per lane row; all reductions via block-diag one-hot MXU matmuls."""
    f32 = jnp.float32
    x = x_ref[...].astype(f32)                                   # (TB, Dp)
    ohg = ohg_ref[...]                                           # (Dp, k*G)
    ohgt_s = ohgt_s_ref[...]                                     # (k*G, Dp), columns scaled by gn_w
    ohl = ohl_ref[...]                                           # (Dp, k)
    ohlt_s = ohlt_s_ref[...]                                     # (k, Dp),   columns scaled by ln_w
    gb = aff_ref[0:1, :]                                         # (1, Dp)
    lb = aff_ref[1:2, :]

    # ---- GroupNorm: two stats matmuls sharing the same RHS (no sublane concat temporaries) ----
    mean_g = jnp.dot(x, ohg, preferred_element_type=f32) * inv_gs          # (TB, k*G)
    ex2_g = jnp.dot(x * x, ohg, preferred_element_type=f32) * inv_gs
    rstd_g = lax.rsqrt(ex2_g - mean_g * mean_g + EPS_GN)                   # group-space rsqrt
    # Broadcast back with gn_w folded into the map: scale = rstd*gw, shift = mean*rstd*gw.
    scale = jnp.dot(rstd_g, ohgt_s, preferred_element_type=f32)            # (TB, Dp)
    shift = jnp.dot(mean_g * rstd_g, ohgt_s, preferred_element_type=f32)   # (TB, Dp)
    y = x * scale - shift + gb

    # ---- LayerNorm per original row (block-diag reduction, ln_w folded into ohlt_s) ----
    mu = jnp.dot(y, ohl, preferred_element_type=f32) * inv_ls              # (TB, k)
    ey2 = jnp.dot(y * y, ohl, preferred_element_type=f32) * inv_ls
    rstd = lax.rsqrt(ey2 - mu * mu + EPS_LN)
    lscale = jnp.dot(rstd, ohlt_s, preferred_element_type=f32)             # (TB, Dp)
    lshift = jnp.dot(mu * rstd, ohlt_s, preferred_element_type=f32)
    o_ref[...] = (y * lscale - lshift + lb).astype(o_ref.dtype)


def _norm_block_kernel_mxu(x_ref, ohg_ref, ohgt_s_ref, aff_ref, o_ref, *, inv_gs):
    """D >= 128, group size not lane-tile aligned: GN via one-hot MXU, LN via dense lane reduce."""
    f32 = jnp.float32
    x = x_ref[...].astype(f32)                                   # (TB, D)
    ohg = ohg_ref[...]                                           # (D, G)
    ohgt_s = ohgt_s_ref[...]                                     # (G, D), columns scaled by gn_w
    gb = aff_ref[0:1, :]
    lw = aff_ref[1:2, :]
    lb = aff_ref[2:3, :]

    # ---- GroupNorm ----
    mean_g = jnp.dot(x, ohg, preferred_element_type=f32) * inv_gs          # (TB, G)
    ex2_g = jnp.dot(x * x, ohg, preferred_element_type=f32) * inv_gs
    rstd_g = lax.rsqrt(ex2_g - mean_g * mean_g + EPS_GN)
    scale = jnp.dot(rstd_g, ohgt_s, preferred_element_type=f32)            # (TB, D) = rstd*gw
    shift = jnp.dot(mean_g * rstd_g, ohgt_s, preferred_element_type=f32)   # (TB, D) = mean*rstd*gw
    y = x * scale - shift + gb

    # ---- LayerNorm over the last dim ----
    inv_ls = 1.0 / x.shape[-1]
    mu = jnp.sum(y, axis=-1, keepdims=True) * inv_ls
    ey2 = jnp.sum(y * y, axis=-1, keepdims=True) * inv_ls
    rstd = lax.rsqrt(ey2 - mu * mu + EPS_LN)
    z = (y - mu) * rstd
    o_ref[...] = (z * lw + lb).astype(o_ref.dtype)


def _norm_block_kernel_xlu(x_ref, aff_ref, o_ref, *, num_groups, group_size):
    """D >= 128, Dg % 128 == 0: group stats via aligned lane slices (XLU only, no MXU)."""
    f32 = jnp.float32
    x = x_ref[...].astype(f32)                                   # (TB, D)
    G, Dg = num_groups, group_size
    inv_gs = 1.0 / Dg
    gw = aff_ref[0:1, :]
    gb = aff_ref[1:2, :]
    lw = aff_ref[2:3, :]
    lb = aff_ref[3:4, :]

    # ---- GroupNorm: per-group lane reductions over lane-tile-aligned slices (no relayout) ----
    parts = []
    for g in range(G):                                           # static unroll, G small
        xg = x[:, g * Dg:(g + 1) * Dg]                           # (TB, Dg), aligned slice
        m = jnp.sum(xg, axis=-1, keepdims=True) * inv_gs
        e2 = jnp.sum(xg * xg, axis=-1, keepdims=True) * inv_gs
        r = lax.rsqrt(e2 - m * m + EPS_GN)
        parts.append((xg - m) * r)
    y = jnp.concatenate(parts, axis=-1)                          # aligned lane concat
    y = y * gw + gb

    # ---- LayerNorm over the last dim ----
    inv_ls = 1.0 / x.shape[-1]
    mu = jnp.sum(y, axis=-1, keepdims=True) * inv_ls
    ey2 = jnp.sum(y * y, axis=-1, keepdims=True) * inv_ls
    rstd = lax.rsqrt(ey2 - mu * mu + EPS_LN)
    z = (y - mu) * rstd
    o_ref[...] = (z * lw + lb).astype(o_ref.dtype)


# --------------------------------------------------------------------------- wrapper helpers
def _round_up(x, m):
    return ((x + m - 1) // m) * m


def _round_down8(x):
    return max(8, (x // 8) * 8)


def _num_tensorcores():
    """Best-effort TensorCore count; default 1 (v5e/v6e). Only used to add grid steps."""
    try:
        info = pltpu.get_tpu_info()
        for name in ("num_cores", "core_count", "tensorcore_count", "num_tensorcores"):
            v = getattr(info, name, None)
            if isinstance(v, int) and v > 0:
                return v
    except Exception:
        pass
    try:
        v = getattr(jax.devices()[0], "num_cores", None)
        if isinstance(v, int) and v > 0:
            return v
    except Exception:
        pass
    return 1


def _vmem_caps():
    """(tile budget bytes, vmem_limit_bytes) derived from physical VMEM (conservative default)."""
    phys = None
    try:
        info = pltpu.get_tpu_info()
        for name in ("vmem_capacity_bytes", "vmem_bytes", "vmem_size_bytes"):
            v = getattr(info, name, None)
            if isinstance(v, int) and v > 0:
                phys = v
                break
    except Exception:
        pass
    if not phys:
        phys = 64 << 20          # conservative: v7x per-core VMEM
    limit = min(int(phys * 0.75), phys - (16 << 20))   # headroom for internal scratch / maps
    limit = max(limit, 32 << 20)
    budget = max(limit - (8 << 20), 16 << 20)
    return budget, limit


def _pick_packing(B, D):
    """Rows packed per lane row so the lane axis is (close to) fully dense."""
    if D >= 128:
        return 1
    k = max(1, 128 // D)
    while k > 1 and B % k != 0:
        k -= 1
    return k


def _pick_row_tile(Bp, Dp, budget_bytes, n_cores):
    """Largest row tile (multiple of 8) within the VMEM budget; add steps only for multi-core."""
    bytes_per_row = Dp * 4 * 10    # dbl-buffered in+out + live f32 temps (post concat removal)
    cap = _round_down8(budget_bytes // max(bytes_per_row, 1))
    cap = min(cap, 2048)
    if n_cores > 1:
        # ~4 grid steps per TensorCore when the batch allows, but never below 256-row tiles.
        per_core = max(_round_down8(Bp // (4 * n_cores)), 256)
        cap = min(cap, per_core)
    return max(8, min(cap, _round_up(Bp, 8)))


_MAP_CACHE = {}


def _get_maps(D, G, k):
    """Cached block-diagonal one-hot maps for (D, G, k)."""
    key = (D, G, k)
    maps = _MAP_CACHE.get(key)
    if maps is None:
        Dg = D // G
        Dp = k * D
        ch = np.arange(Dp)
        gid = (ch // D) * G + (ch % D) // Dg
        ohg = (gid[:, None] == np.arange(k * G)[None, :]).astype(np.float32)    # (Dp, k*G)
        rid = ch // D
        ohl = (rid[:, None] == np.arange(k)[None, :]).astype(np.float32)        # (Dp, k)
        maps = (jnp.asarray(ohg), jnp.asarray(ohg.T), jnp.asarray(ohl), jnp.asarray(ohl.T))
        _MAP_CACHE[key] = maps
    return maps


# --------------------------------------------------------------------------- public entry
def normalization_block(x, gn_w, gn_b, ln_w, ln_b, *, num_groups=8, row_tile=None):
    B, D = x.shape
    G = num_groups
    assert D % G == 0, "dim must be divisible by num_groups"
    Dg = D // G
    f32 = jnp.float32

    # Pack k original rows per lane row when D < 128 to restore lane density.
    k = _pick_packing(B, D)
    Bp, Dp = B // k, k * D
    xp = x.reshape(Bp, Dp)

    budget, vmem_limit = _vmem_caps()
    n_cores = _num_tensorcores()
    tb = row_tile if row_tile is not None else _pick_row_tile(Bp, Dp, budget, n_cores)

    # Pad the (packed) batch up to a multiple of the row tile; padded rows are throwaway.
    Bpad = _round_up(Bp, tb)
    if Bpad != Bp:
        xp = jnp.pad(xp, ((0, Bpad - Bp), (0, 0)))

    row_spec = pl.BlockSpec((tb, Dp), lambda i: (i, 0))

    def rep(shape):   # replicated (grid-invariant) block
        return pl.BlockSpec(shape, lambda i: (0, 0))

    if k > 1:
        # Packed (D < 128) path.
        ohg, ohgt, ohl, ohlt = _get_maps(D, G, k)
        gwt = jnp.tile(gn_w.astype(f32), k)
        lwt = jnp.tile(ln_w.astype(f32), k)
        ohgt_s = ohgt * gwt[None, :]                       # fold gn_w into broadcast-back map
        ohlt_s = ohlt * lwt[None, :]                       # fold ln_w into broadcast-back map
        aff = jnp.stack([jnp.tile(gn_b.astype(f32), k), jnp.tile(ln_b.astype(f32), k)])   # (2, Dp)
        kernel = functools.partial(_norm_block_kernel_packed, inv_gs=1.0 / Dg, inv_ls=1.0 / D)
        extra_args = (ohg, ohgt_s, ohl, ohlt_s, aff)
        extra_specs = [rep((Dp, k * G)), rep((k * G, Dp)), rep((Dp, k)), rep((k, Dp)), rep((2, Dp))]
    elif Dg % 128 == 0:
        # Lane-tile-aligned groups: pure XLU path, no one-hot maps, no MXU.
        aff = jnp.stack([gn_w.astype(f32), gn_b.astype(f32),
                         ln_w.astype(f32), ln_b.astype(f32)])                              # (4, D)
        kernel = functools.partial(_norm_block_kernel_xlu, num_groups=G, group_size=Dg)
        extra_args = (aff,)
        extra_specs = [rep((4, D))]
    else:
        # D >= 128 but group boundaries not lane-aligned: keep one-hot MXU for the group stats.
        ohg, ohgt, _, _ = _get_maps(D, G, 1)
        ohgt_s = ohgt * gn_w.astype(f32)[None, :]
        aff = jnp.stack([gn_b.astype(f32), ln_w.astype(f32), ln_b.astype(f32)])            # (3, D)
        kernel = functools.partial(_norm_block_kernel_mxu, inv_gs=1.0 / Dg)
        extra_args = (ohg, ohgt_s, aff)
        extra_specs = [rep((D, G)), rep((G, D)), rep((3, D))]

    out = pl.pallas_call(
        kernel,
        out_shape=jax.ShapeDtypeStruct((Bpad, Dp), x.dtype),
        grid_spec=pltpu.PrefetchScalarGridSpec(
            num_scalar_prefetch=0,
            grid=(Bpad // tb,),
            in_specs=[row_spec, *extra_specs],
            out_specs=row_spec,
        ),
        compiler_params=pltpu.CompilerParams(
            dimension_semantics=("parallel",),
            vmem_limit_bytes=vmem_limit,
        ),
    )(xp, *extra_args)

    if Bpad != Bp:
        out = out[:Bp]
    return out.reshape(B, D)


# --------------------------------------------------------------------------- reference & test
def reference(x, gn_w, gn_b, ln_w, ln_b, num_groups=8):
    """Pure-JAX reference matching PyTorch GroupNorm -> LayerNorm on (B, D)."""
    B, D = x.shape
    xg = x.reshape(B, num_groups, D // num_groups).astype(jnp.float32)
    m = xg.mean(-1, keepdims=True)
    v = ((xg - m) ** 2).mean(-1, keepdims=True)          # biased variance
    y = (xg - m) / jnp.sqrt(v + EPS_GN)
    y = y.reshape(B, D) * gn_w + gn_b
    m2 = y.mean(-1, keepdims=True)
    v2 = ((y - m2) ** 2).mean(-1, keepdims=True)
    z = (y - m2) / jnp.sqrt(v2 + EPS_LN)
    return (z * ln_w + ln_b).astype(x.dtype)


def _make_params(key, D):
    kgw, kgb, klw, klb = jax.random.split(key, 4)
    gn_w = 1.0 + 0.1 * jax.random.normal(kgw, (D,), dtype=jnp.float32)
    gn_b = 0.1 * jax.random.normal(kgb, (D,), dtype=jnp.float32)
    ln_w = 1.0 + 0.1 * jax.random.normal(klw, (D,), dtype=jnp.float32)
    ln_b = 0.1 * jax.random.normal(klb, (D,), dtype=jnp.float32)
    return gn_w, gn_b, ln_w, ln_b


def _check(name, B, D, G, key_x, key_p):
    x = jax.random.normal(key_x, (B, D), dtype=jnp.float32)
    p = _make_params(key_p, D)
    out = jax.block_until_ready(normalization_block(x, *p, num_groups=G))
    ref = reference(x, *p, num_groups=G)
    assert out.shape == (B, D) and out.dtype == x.dtype
    err = jnp.max(jnp.abs(out - ref))
    assert jnp.allclose(out, ref, atol=5e-5, rtol=5e-5), f"{name}: max abs err = {err}"


if __name__ == "__main__":
    key = jax.random.PRNGKey(0)
    k1, k2, k3, kp1, kp2, kp3 = jax.random.split(key, 6)

    # Test 1: small D (< 128) -> lane-packed path (k = 4, Dp = 128) + row padding (Bp=2 -> 8).
    _check("packed", B=8, D=32, G=8, key_x=k1, key_p=kp1)

    # Test 2: D >= 128, Dg = 32 (not lane-aligned) -> one-hot MXU path with dense LayerNorm.
    _check("mxu", B=32, D=256, G=8, key_x=k2, key_p=kp2)

    # Test 3: D >= 128, Dg = 128 (lane-tile aligned) -> pure-XLU group-stats path.
    _check("xlu", B=16, D=1024, G=8, key_x=k3, key_p=kp3)

    print("KERNEL_OK")
</pallas_src>

<mosaic_0001>
module attributes {stable_mosaic.version = 11 : i64} {
  func.func @_norm_block_kernel_packed(%arg0: i32, %arg1: memref<8x128xf32, #tpu.memory_space<vmem>>, %arg2: memref<128x32xf32, #tpu.memory_space<vmem>>, %arg3: memref<32x128xf32, #tpu.memory_space<vmem>>, %arg4: memref<128x4xf32, #tpu.memory_space<vmem>>, %arg5: memref<4x128xf32, #tpu.memory_space<vmem>>, %arg6: memref<2x128xf32, #tpu.memory_space<vmem>>, %arg7: memref<8x128xf32, #tpu.memory_space<vmem>>) attributes {dimension_semantics = [#tpu.dimension_semantics<parallel>], iteration_bounds = array<i64: 1>, scalar_prefetch = 0 : i64, scratch_operands = 0 : i64, tpu.core_type = #tpu.core_type<tc>, window_params = [{transform_indices = @transform_0, window_bounds = array<i64: 8, 128>}, {pipeline_mode = #tpu.pipeline_mode<synchronous>, transform_indices = @transform_1, window_bounds = array<i64: 128, 32>}, {pipeline_mode = #tpu.pipeline_mode<synchronous>, transform_indices = @transform_2, window_bounds = array<i64: 32, 128>}, {pipeline_mode = #tpu.pipeline_mode<synchronous>, transform_indices = @transform_3, window_bounds = array<i64: 128, 4>}, {pipeline_mode = #tpu.pipeline_mode<synchronous>, transform_indices = @transform_4, window_bounds = array<i64: 4, 128>}, {pipeline_mode = #tpu.pipeline_mode<synchronous>, transform_indices = @transform_5, window_bounds = array<i64: 2, 128>}, {transform_indices = @transform_6, window_bounds = array<i64: 8, 128>}]} {
    %c0 = arith.constant 0 : index
    %c0_0 = arith.constant 0 : index
    %0 = vector.load %arg1[%c0, %c0_0] : memref<8x128xf32, #tpu.memory_space<vmem>>, vector<8x128xf32>
    %c0_1 = arith.constant 0 : index
    %c0_2 = arith.constant 0 : index
    %1 = vector.load %arg2[%c0_1, %c0_2] : memref<128x32xf32, #tpu.memory_space<vmem>>, vector<128x32xf32>
    %c0_3 = arith.constant 0 : index
    %c0_4 = arith.constant 0 : index
    %2 = vector.load %arg3[%c0_3, %c0_4] : memref<32x128xf32, #tpu.memory_space<vmem>>, vector<32x128xf32>
    %c0_5 = arith.constant 0 : index
    %c0_6 = arith.constant 0 : index
    %3 = vector.load %arg4[%c0_5, %c0_6] : memref<128x4xf32, #tpu.memory_space<vmem>>, vector<128x4xf32>
    %c0_7 = arith.constant 0 : index
    %c0_8 = arith.constant 0 : index
    %4 = vector.load %arg5[%c0_7, %c0_8] : memref<4x128xf32, #tpu.memory_space<vmem>>, vector<4x128xf32>
    %c0_9 = arith.constant 0 : index
    %c0_10 = arith.constant 0 : index
    %5 = vector.load %arg6[%c0_9, %c0_10] : memref<2x128xf32, #tpu.memory_space<vmem>>, vector<1x128xf32>
    %c1 = arith.constant 1 : index
    %c0_11 = arith.constant 0 : index
    %6 = vector.load %arg6[%c1, %c0_11] : memref<2x128xf32, #tpu.memory_space<vmem>>, vector<1x128xf32>
    %cst = arith.constant dense<0.000000e+00> : vector<8x32xf32>
    %7 = tpu.matmul %0, %1, %cst {dimension_numbers = #tpu.dot_dimension_numbers<[1], [0], [0], [1], [0, 0, 1, 1], [], []>} : vector<8x128xf32>, vector<128x32xf32>, vector<8x32xf32> -> vector<8x32xf32>
    %cst_12 = arith.constant 2.500000e-01 : f32
    %8 = vector.broadcast %cst_12 : f32 to vector<8x32xf32>
    %9 = arith.mulf %7, %8 : vector<8x32xf32>
    %10 = arith.mulf %0, %0 : vector<8x128xf32>
    %cst_13 = arith.constant dense<0.000000e+00> : vector<8x32xf32>
    %11 = tpu.matmul %10, %1, %cst_13 {dimension_numbers = #tpu.dot_dimension_numbers<[1], [0], [0], [1], [0, 0, 1, 1], [], []>} : vector<8x128xf32>, vector<128x32xf32>, vector<8x32xf32> -> vector<8x32xf32>
    %cst_14 = arith.constant 2.500000e-01 : f32
    %12 = vector.broadcast %cst_14 : f32 to vector<8x32xf32>
    %13 = arith.mulf %11, %12 : vector<8x32xf32>
    %14 = arith.mulf %9, %9 : vector<8x32xf32>
    %15 = arith.subf %13, %14 : vector<8x32xf32>
    %cst_15 = arith.constant 9.99999974E-6 : f32
    %16 = vector.broadcast %cst_15 : f32 to vector<8x32xf32>
    %17 = arith.addf %15, %16 : vector<8x32xf32>
    %18 = math.rsqrt %17 : vector<8x32xf32>
    %cst_16 = arith.constant dense<0.000000e+00> : vector<8x128xf32>
    %19 = tpu.matmul %18, %2, %cst_16 {dimension_numbers = #tpu.dot_dimension_numbers<[1], [0], [0], [1], [0, 0, 1, 1], [], []>} : vector<8x32xf32>, vector<32x128xf32>, vector<8x128xf32> -> vector<8x128xf32>
    %20 = arith.mulf %9, %18 : vector<8x32xf32>
    %cst_17 = arith.constant dense<0.000000e+00> : vector<8x128xf32>
    %21 = tpu.matmul %20, %2, %cst_17 {dimension_numbers = #tpu.dot_dimension_numbers<[1], [0], [0], [1], [0, 0, 1, 1], [], []>} : vector<8x32xf32>, vector<32x128xf32>, vector<8x128xf32> -> vector<8x128xf32>
    %22 = arith.mulf %0, %19 : vector<8x128xf32>
    %23 = arith.subf %22, %21 : vector<8x128xf32>
    %24 = vector.broadcast %5 : vector<1x128xf32> to vector<8x128xf32>
    %25 = arith.addf %23, %24 : vector<8x128xf32>
    %cst_18 = arith.constant dense<0.000000e+00> : vector<8x4xf32>
    %26 = tpu.matmul %25, %3, %cst_18 {dimension_numbers = #tpu.dot_dimension_numbers<[1], [0], [0], [1], [0, 0, 1, 1], [], []>} : vector<8x128xf32>, vector<128x4xf32>, vector<8x4xf32> -> vector<8x4xf32>
    %cst_19 = arith.constant 3.125000e-02 : f32
    %27 = vector.broadcast %cst_19 : f32 to vector<8x4xf32>
    %28 = arith.mulf %26, %27 : vector<8x4xf32>
    %29 = arith.mulf %25, %25 : vector<8x128xf32>
    %cst_20 = arith.constant dense<0.000000e+00> : vector<8x4xf32>
    %30 = tpu.matmul %29, %3, %cst_20 {dimension_numbers = #tpu.dot_dimension_numbers<[1], [0], [0], [1], [0, 0, 1, 1], [], []>} : vector<8x128xf32>, vector<128x4xf32>, vector<8x4xf32> -> vector<8x4xf32>
    %cst_21 = arith.constant 3.125000e-02 : f32
    %31 = vector.broadcast %cst_21 : f32 to vector<8x4xf32>
    %32 = arith.mulf %30, %31 : vector<8x4xf32>
    %33 = arith.mulf %28, %28 : vector<8x4xf32>
    %34 = arith.subf %32, %33 : vector<8x4xf32>
    %cst_22 = arith.constant 9.99999974E-6 : f32
    %35 = vector.broadcast %cst_22 : f32 to vector<8x4xf32>
    %36 = arith.addf %34, %35 : vector<8x4xf32>
    %37 = math.rsqrt %36 : vector<8x4xf32>
    %cst_23 = arith.constant dense<0.000000e+00> : vector<8x128xf32>
    %38 = tpu.matmul %37, %4, %cst_23 {dimension_numbers = #tpu.dot_dimension_numbers<[1], [0], [0], [1], [0, 0, 1, 1], [], []>} : vector<8x4xf32>, vector<4x128xf32>, vector<8x128xf32> -> vector<8x128xf32>
    %39 = arith.mulf %28, %37 : vector<8x4xf32>
    %cst_24 = arith.constant dense<0.000000e+00> : vector<8x128xf32>
    %40 = tpu.matmul %39, %4, %cst_24 {dimension_numbers = #tpu.dot_dimension_numbers<[1], [0], [0], [1], [0, 0, 1, 1], [], []>} : vector<8x4xf32>, vector<4x128xf32>, vector<8x128xf32> -> vector<8x128xf32>
    %41 = arith.mulf %25, %38 : vector<8x128xf32>
    %42 = arith.subf %41, %40 : vector<8x128xf32>
    %43 = vector.broadcast %6 : vector<1x128xf32> to vector<8x128xf32>
    %44 = arith.addf %42, %43 : vector<8x128xf32>
    %c0_25 = arith.constant 0 : index
    %c0_26 = arith.constant 0 : index
    %45 = vector.load %arg7[%c0_25, %c0_26] : memref<8x128xf32, #tpu.memory_space<vmem>>, vector<8x128xf32>
    tpu.vector_store %arg7[%c0_25, %c0_26], %44 {strides = array<i32>} : memref<8x128xf32, #tpu.memory_space<vmem>>, vector<8x128xf32>,
    return
  }
  func.func @transform_0(%arg0: i32) -> (i32, i32) {
    %c0_i32 = arith.constant 0 : i32
    %c0_i32_0 = arith.constant 0 : i32
    return %arg0, %c0_i32 : i32, i32
  }
  func.func @transform_1(%arg0: i32) -> (i32, i32) {
    %c0_i32 = arith.constant 0 : i32
    %c0_i32_0 = arith.constant 0 : i32
    %c0_i32_1 = arith.constant 0 : i32
    return %c0_i32, %c0_i32_0 : i32, i32
  }
  func.func @transform_2(%arg0: i32) -> (i32, i32) {
    %c0_i32 = arith.constant 0 : i32
    %c0_i32_0 = arith.constant 0 : i32
    %c0_i32_1 = arith.constant 0 : i32
    return %c0_i32, %c0_i32_0 : i32, i32
  }
  func.func @transform_3(%arg0: i32) -> (i32, i32) {
    %c0_i32 = arith.constant 0 : i32
    %c0_i32_0 = arith.constant 0 : i32
    %c0_i32_1 = arith.constant 0 : i32
    return %c0_i32, %c0_i32_0 : i32, i32
  }
  func.func @transform_4(%arg0: i32) -> (i32, i32) {
    %c0_i32 = arith.constant 0 : i32
    %c0_i32_0 = arith.constant 0 : i32
    %c0_i32_1 = arith.constant 0 : i32
    return %c0_i32, %c0_i32_0 : i32, i32
  }
  func.func @transform_5(%arg0: i32) -> (i32, i32) {
    %c0_i32 = arith.constant 0 : i32
    %c0_i32_0 = arith.constant 0 : i32
    %c0_i32_1 = arith.constant 0 : i32
    return %c0_i32, %c0_i32_0 : i32, i32
  }
  func.func @transform_6(%arg0: i32) -> (i32, i32) {
    %c0_i32 = arith.constant 0 : i32
    %c0_i32_0 = arith.constant 0 : i32
    return %arg0, %c0_i32 : i32, i32
  }
}

</mosaic_0001>

<llo_original>
// kernel: tpu_custom_call.1
$region0: #{tpu_custom_call.1}
  #allocation0 [shape = 'u32[]', space=smem, size = 0x4, offset = 0x4, fixed_abs, tag = 'smem constant byte address 0x4 - core index']
  #allocation1 [shape = 'u32[144,128]{1,0:T(1,128)}', space=vmem, size = 0x12000, scoped, tag = 'internal scratch']
  %s0 = inlined_call_operand.vmem [shape: f32[8,128], index: 0, kind: input, shape index: {}]
  %s1 = inlined_call_operand.vmem [shape: f32[128,32], index: 1, kind: input, shape index: {}]
  %s2 = inlined_call_operand.vmem [shape: f32[32,128], index: 2, kind: input, shape index: {}]
  %s3 = inlined_call_operand.vmem [shape: f32[128,4], index: 3, kind: input, shape index: {}]
  %s4 = inlined_call_operand.vmem [shape: f32[4,128], index: 4, kind: input, shape index: {}]
  %s5 = inlined_call_operand.vmem [shape: f32[2,128], index: 5, kind: input, shape index: {}]
  %s6 = inlined_call_operand.hbm [shape: f32[8,128], index: 6, kind: output, shape index: {}]
  %s7 = sld [smem:[#allocation0]]
  $region34: #{tpu_custom_call.1} parent=0
    _
  %s9 = ssub.s32 1, %s7
  %s10 = scalar_select 0, %s9, %s7
  $region1: #{tpu_custom_call.1} parent=0
    #allocation2 [shape = 'u8[4096]{0}', space=vmem, size = 0x1000, scoped, tag = 'output window, operand 0, single buffered']
    #allocation3 [shape = 's32[1]{0}', space=sflag, size = 0x4, scoped, tag = 'scoped memory for tpu_custom_call.1']
    %11 = vsyncpa [#allocation3], 0
    // Predicated region
    $region2: #{tpu_custom_call.1} parent=1 // pred_check
      _
    $region3: #{tpu_custom_call.1} parent=1 // pred_check_branch
      %13 = sbr.rel (0) target = $region5
    $region4: #{tpu_custom_call.1} parent=1 // pred_region
      _
    $region5: #{tpu_custom_call.1} parent=1 // pred_fallthru
      _
    // Predicated region
    $region6: #{tpu_custom_call.1} parent=1 // pred_check
      _
    $region7: #{tpu_custom_call.1} parent=1 // pred_check_branch
      %15 = sbr.rel (0) target = $region9
    $region8: #{tpu_custom_call.1} parent=1 // pred_region
      _
    $region9: #{tpu_custom_call.1} parent=1 // pred_fallthru
      _
    // Predicated region
    $region10: #{tpu_custom_call.1} parent=1 // pred_check
      _
    $region11: #{tpu_custom_call.1} parent=1 // pred_check_branch
      %17 = sbr.rel (0) target = $region13
    $region12: #{tpu_custom_call.1} parent=1 // pred_region
      _
    $region13: #{tpu_custom_call.1} parent=1 // pred_fallthru
      _
    // Predicated region
    $region14: #{tpu_custom_call.1} parent=1 // pred_check
      _
    $region15: #{tpu_custom_call.1} parent=1 // pred_check_branch
      %19 = sbr.rel (0) target = $region17
    $region16: #{tpu_custom_call.1} parent=1 // pred_region
      _
    $region17: #{tpu_custom_call.1} parent=1 // pred_fallthru
      _
    // Predicated region
    $region18: #{tpu_custom_call.1} parent=1 // pred_check
      _
    $region19: #{tpu_custom_call.1} parent=1 // pred_check_branch
      %21 = sbr.rel (0) target = $region21
    $region20: #{tpu_custom_call.1} parent=1 // pred_region
      _
    $region21: #{tpu_custom_call.1} parent=1 // pred_fallthru
      _
    // Predicated region
    $region22: #{tpu_custom_call.1} parent=1 // pred_check
      _
    $region23: #{tpu_custom_call.1} parent=1 // pred_check_branch
      %23 = sbr.rel (0) target = $region25
    $region24: #{tpu_custom_call.1} parent=1 // pred_region
      _
    $region25: #{tpu_custom_call.1} parent=1 // pred_fallthru
      _
    %v24 = vld [vmem:[%s0] sm:$0xff]
    %v25 = vld [vmem:[%s1] sm:$0xff]
    %v26 = vld [vmem:[%s1 + $0x8] sm:$0xff]
    %v27 = vld [vmem:[%s1 + $0x10] sm:$0xff]
    %v28 = vld [vmem:[%s1 + $0x18] sm:$0xff]
    %v29 = vld [vmem:[%s1 + $0x20] sm:$0xff]
    %v30 = vld [vmem:[%s1 + $0x28] sm:$0xff]
    %v31 = vld [vmem:[%s1 + $0x30] sm:$0xff]
    %v32 = vld [vmem:[%s1 + $0x38] sm:$0xff]
    %v33 = vld [vmem:[%s1 + $0x40] sm:$0xff]
    %v34 = vld [vmem:[%s1 + $0x48] sm:$0xff]
    %v35 = vld [vmem:[%s1 + $0x50] sm:$0xff]
    %v36 = vld [vmem:[%s1 + $0x58] sm:$0xff]
    %v37 = vld [vmem:[%s1 + $0x60] sm:$0xff]
    %v38 = vld [vmem:[%s1 + $0x68] sm:$0xff]
    %v39 = vld [vmem:[%s1 + $0x70] sm:$0xff]
    %v40 = vld [vmem:[%s1 + $0x78] sm:$0xff]
    %v41 = vld [vmem:[%s2] sm:$0xff]
    %v42 = vld [vmem:[%s2 + $0x8] sm:$0xff]
    %v43 = vld [vmem:[%s2 + $0x10] sm:$0xff]
    %v44 = vld [vmem:[%s2 + $0x18] sm:$0xff]
    %v45 = vld [vmem:[%s3] sm:$0xff]
    %v46 = vld [vmem:[%s3 + $0x8] sm:$0xff]
    %v47 = vld [vmem:[%s3 + $0x10] sm:$0xff]
    %v48 = vld [vmem:[%s3 + $0x18] sm:$0xff]
    %v49 = vld [vmem:[%s3 + $0x20] sm:$0xff]
    %v50 = vld [vmem:[%s3 + $0x28] sm:$0xff]
    %v51 = vld [vmem:[%s3 + $0x30] sm:$0xff]
    %v52 = vld [vmem:[%s3 + $0x38] sm:$0xff]
    %v53 = vld [vmem:[%s3 + $0x40] sm:$0xff]
    %v54 = vld [vmem:[%s3 + $0x48] sm:$0xff]
    %v55 = vld [vmem:[%s3 + $0x50] sm:$0xff]
    %v56 = vld [vmem:[%s3 + $0x58] sm:$0xff]
    %v57 = vld [vmem:[%s3 + $0x60] sm:$0xff]
    %v58 = vld [vmem:[%s3 + $0x68] sm:$0xff]
    %v59 = vld [vmem:[%s3 + $0x70] sm:$0xff]
    %v60 = vld [vmem:[%s3 + $0x78] sm:$0xff]
    %v61 = vld [vmem:[%s4] sm:$0xf]
    %v62 = vld [vmem:[%s5] sm:$0x1]
    %v63 = vld [vmem:[%s5 + $0x1] sm:$0x1]
    %64 = vmatprep.subr.mxu0 0.0
    %65 = vmatpush1.msra.mxu0 %v40
    %66 = vmatprep.subr.mxu0 0.0
    %67 = vmatpush1.msra.mxu0 %v39
    %68 = vmatprep.subr.mxu0 0.0
    %69 = vmatpush1.msra.mxu0 %v38
    %70 = vmatprep.subr.mxu0 0.0
    %71 = vmatpush1.msra.mxu0 %v37
    %72 = vmatprep.subr.mxu0 0.0
    %73 = vmatpush1.msra.mxu0 %v36
    %74 = vmatprep.subr.mxu0 0.0
    %75 = vmatpush1.msra.mxu0 %v35
    %76 = vmatprep.subr.mxu0 0.0
    %77 = vmatpush1.msra.mxu0 %v34
    %78 = vmatprep.subr.mxu0 0.0
    %79 = vmatpush1.msra.mxu0 %v33
    %80 = vmatprep.subr.mxu0 0.0
    %81 = vmatpush1.msra.mxu0 %v32
    %82 = vmatprep.subr.mxu0 0.0
    %83 = vmatpush1.msra.mxu0 %v31
    %84 = vmatprep.subr.mxu0 0.0
    %85 = vmatpush1.msra.mxu0 %v30
    %86 = vmatprep.subr.mxu0 0.0
    %87 = vmatpush1.msra.mxu0 %v29
    %88 = vmatprep.subr.mxu0 0.0
    %89 = vmatpush1.msra.mxu0 %v28
    %90 = vmatprep.subr.mxu0 0.0
    %91 = vmatpush1.msra.mxu0 %v27
    %92 = vmatprep.subr.mxu0 0.0
    %93 = vmatpush1.msra.mxu0 %v26
    %94 = vmatprep.subr.mxu0 0.0
    %95 = vmatpush1.msra.mxu0 %v25
    %96 = vmatprep.subr.mxu0 0.0
    %97 = vmatpush2.msra.mxu0 0.0
    %98 = vmatprep.subr.mxu0 0.0
    %99 = vmatpush2.msra.mxu0 0.0
    %100 = vmatprep.subr.mxu0 0.0
    %101 = vmatpush2.msra.mxu0 0.0
    %102 = vmatprep.subr.mxu0 0.0
    %103 = vmatpush2.msra.mxu0 0.0
    %104 = vmatprep.subr.mxu0 0.0
    %105 = vmatpush2.msra.mxu0 0.0
    %106 = vmatprep.subr.mxu0 0.0
    %107 = vmatpush2.msra.mxu0 0.0
    %108 = vmatprep.subr.mxu0 0.0
    %109 = vmatpush2.msra.mxu0 0.0
    %110 = vmatprep.subr.mxu0 0.0
    %111 = vmatpush2.msra.mxu0 0.0
    %112 = vmatprep.subr.mxu0 0.0
    %113 = vmatpush2.msra.mxu0 0.0
    %114 = vmatprep.subr.mxu0 0.0
    %115 = vmatpush2.msra.mxu0 0.0
    %116 = vmatprep.subr.mxu0 0.0
    %117 = vmatpush2.msra.mxu0 0.0
    %118 = vmatprep.subr.mxu0 0.0
    %119 = vmatpush2.msra.mxu0 0.0
    %120 = vmatprep.subr.mxu0 0.0
    %121 = vmatpush2.msra.mxu0 0.0
    %122 = vmatprep.subr.mxu0 0.0
    %123 = vmatpush2.msra.mxu0 0.0
    %124 = vmatprep.subr.mxu0 0.0
    %125 = vmatpush2.msra.mxu0 0.0
    %126 = vmatprep.subr.mxu0 0.0
    %127 = vmatpush2.msra.mxu0 0.0
    %128 = vmatprep.mubr.f32.mxu0 0.0
    %129 = vmatmul.mubr.f32.gmra.mxu0 %v24
    %v130 = vpop.f32.mrf.mxu0
    %v131 = vadd.f32 0.0, %v130
    %v132 = vpop.f32.mrf.mxu0
    %133 = vdwg.mxu0
    %v134 = vmul.f32 %v131, 0.25
    %v135 = vmul.f32 %v24, %v24
    %136 = vmatprep.subr.mxu0 0.0
    %137 = vmatpush1.msra.mxu0 %v40
    %138 = vmatprep.subr.mxu0 0.0
    %139 = vmatpush1.msra.mxu0 %v39
    %140 = vmatprep.subr.mxu0 0.0
    %141 = vmatpush1.msra.mxu0 %v38
    %142 = vmatprep.subr.mxu0 0.0
    %143 = vmatpush1.msra.mxu0 %v37
    %144 = vmatprep.subr.mxu0 0.0
    %145 = vmatpush1.msra.mxu0 %v36
    %146 = vmatprep.subr.mxu0 0.0
    %147 = vmatpush1.msra.mxu0 %v35
    %148 = vmatprep.subr.mxu0 0.0
    %149 = vmatpush1.msra.mxu0 %v34
    %150 = vmatprep.subr.mxu0 0.0
    %151 = vmatpush1.msra.mxu0 %v33
    %152 = vmatprep.subr.mxu0 0.0
    %153 = vmatpush1.msra.mxu0 %v32
    %154 = vmatprep.subr.mxu0 0.0
    %155 = vmatpush1.msra.mxu0 %v31
    %156 = vmatprep.subr.mxu0 0.0
    %157 = vmatpush1.msra.mxu0 %v30
    %158 = vmatprep.subr.mxu0 0.0
    %159 = vmatpush1.msra.mxu0 %v29
    %160 = vmatprep.subr.mxu0 0.0
    %161 = vmatpush1.msra.mxu0 %v28
    %162 = vmatprep.subr.mxu0 0.0
    %163 = vmatpush1.msra.mxu0 %v27
    %164 = vmatprep.subr.mxu0 0.0
    %165 = vmatpush1.msra.mxu0 %v26
    %166 = vmatprep.subr.mxu0 0.0
    %167 = vmatpush1.msra.mxu0 %v25
    %168 = vmatprep.subr.mxu0 0.0
    %169 = vmatpush2.msra.mxu0 0.0
    %170 = vmatprep.subr.mxu0 0.0
    %171 = vmatpush2.msra.mxu0 0.0
    %172 = vmatprep.subr.mxu0 0.0
    %173 = vmatpush2.msra.mxu0 0.0
    %174 = vmatprep.subr.mxu0 0.0
    %175 = vmatpush2.msra.mxu0 0.0
    %176 = vmatprep.subr.mxu0 0.0
    %177 = vmatpush2.msra.mxu0 0.0
    %178 = vmatprep.subr.mxu0 0.0
    %179 = vmatpush2.msra.mxu0 0.0
    %180 = vmatprep.subr.mxu0 0.0
    %181 = vmatpush2.msra.mxu0 0.0
    %182 = vmatprep.subr.mxu0 0.0
    %183 = vmatpush2.msra.mxu0 0.0
    %184 = vmatprep.subr.mxu0 0.0
    %185 = vmatpush2.msra.mxu0 0.0
    %186 = vmatprep.subr.mxu0 0.0
    %187 = vmatpush2.msra.mxu0 0.0
    %188 = vmatprep.subr.mxu0 0.0
    %189 = vmatpush2.msra.mxu0 0.0
    %190 = vmatprep.subr.mxu0 0.0
    %191 = vmatpush2.msra.mxu0 0.0
    %192 = vmatprep.subr.mxu0 0.0
    %193 = vmatpush2.msra.mxu0 0.0
    %194 = vmatprep.subr.mxu0 0.0
    %195 = vmatpush2.msra.mxu0 0.0
    %196 = vmatprep.subr.mxu0 0.0
    %197 = vmatpush2.msra.mxu0 0.0
    %198 = vmatprep.subr.mxu0 0.0
    %199 = vmatpush2.msra.mxu0 0.0
    %200 = vmatprep.mubr.f32.mxu0 0.0
    %201 = vmatmul.mubr.f32.gmra.mxu0 %v135
    %v202 = vpop.f32.mrf.mxu0
    %v203 = vadd.f32 0.0, %v202
    %v204 = vpop.f32.mrf.mxu0
    %205 = vdwg.mxu0
    %v206 = vmul.f32 %v203, 0.25
    %v207 = vmul.f32 %v134, %v134
    %v208 = vsub.f32 %v206, %v207
    %v209 = vadd.f32 %v208, 1e-05
    %v210 = vrsqrt.pop %v209
    %vm211 = vcmask 261120
    %v213 = vsel %vm211, %v210, 0
    %215 = vmatprep.subr.mxu0 0.0
    %216 = vmatpush1.msra.mxu0 0.0
    %217 = vmatprep.subr.mxu0 0.0
    %218 = vmatpush1.msra.mxu0 0.0
    %219 = vmatprep.subr.mxu0 0.0
    %220 = vmatpush1.msra.mxu0 0.0
    %221 = vmatprep.subr.mxu0 0.0
    %222 = vmatpush1.msra.mxu0 0.0
    %223 = vmatprep.subr.mxu0 0.0
    %224 = vmatpush1.msra.mxu0 0.0
    %225 = vmatprep.subr.mxu0 0.0
    %226 = vmatpush1.msra.mxu0 0.0
    %227 = vmatprep.subr.mxu0 0.0
    %228 = vmatpush1.msra.mxu0 0.0
    %229 = vmatprep.subr.mxu0 0.0
    %230 = vmatpush1.msra.mxu0 0.0
    %231 = vmatprep.subr.mxu0 0.0
    %232 = vmatpush1.msra.mxu0 0.0
    %233 = vmatprep.subr.mxu0 0.0
    %234 = vmatpush1.msra.mxu0 0.0
    %235 = vmatprep.subr.mxu0 0.0
    %236 = vmatpush1.msra.mxu0 0.0
    %237 = vmatprep.subr.mxu0 0.0
    %238 = vmatpush1.msra.mxu0 0.0
    %239 = vmatprep.subr.mxu0 0.0
    %240 = vmatpush1.msra.mxu0 %v44
    %241 = vmatprep.subr.mxu0 0.0
    %242 = vmatpush1.msra.mxu0 %v43
    %243 = vmatprep.subr.mxu0 0.0
    %244 = vmatpush1.msra.mxu0 %v42
    %245 = vmatprep.subr.mxu0 0.0
    %246 = vmatpush1.msra.mxu0 %v41
    %247 = vmatprep.subr.mxu0 0.0
    %248 = vmatpush2.msra.mxu0 0.0
    %249 = vmatprep.subr.mxu0 0.0
    %250 = vmatpush2.msra.mxu0 0.0
    %251 = vmatprep.subr.mxu0 0.0
    %252 = vmatpush2.msra.mxu0 0.0
    %253 = vmatprep.subr.mxu0 0.0
    %254 = vmatpush2.msra.mxu0 0.0
    %255 = vmatprep.subr.mxu0 0.0
    %256 = vmatpush2.msra.mxu0 0.0
    %257 = vmatprep.subr.mxu0 0.0
    %258 = vmatpush2.msra.mxu0 0.0
    %259 = vmatprep.subr.mxu0 0.0
    %260 = vmatpush2.msra.mxu0 0.0
    %261 = vmatprep.subr.mxu0 0.0
    %262 = vmatpush2.msra.mxu0 0.0
    %263 = vmatprep.subr.mxu0 0.0
    %264 = vmatpush2.msra.mxu0 0.0
    %265 = vmatprep.subr.mxu0 0.0
    %266 = vmatpush2.msra.mxu0 0.0
    %267 = vmatprep.subr.mxu0 0.0
    %268 = vmatpush2.msra.mxu0 0.0
    %269 = vmatprep.subr.mxu0 0.0
    %270 = vmatpush2.msra.mxu0 0.0
    %271 = vmatprep.subr.mxu0 0.0
    %272 = vmatpush2.msra.mxu0 0.0
    %273 = vmatprep.subr.mxu0 0.0
    %274 = vmatpush2.msra.mxu0 0.0
    %275 = vmatprep.subr.mxu0 0.0
    %276 = vmatpush2.msra.mxu0 0.0
    %277 = vmatprep.subr.mxu0 0.0
    %278 = vmatpush2.msra.mxu0 0.0
    %279 = vmatprep.mubr.f32.mxu0 0.0
    %280 = vmatmul.mubr.f32.gmra.mxu0 %v213
    %v281 = vpop.f32.mrf.mxu0
    %v282 = vadd.f32 0.0, %v281
    %v283 = vpop.f32.mrf.mxu0
    %284 = vdwg.mxu0
    %v285 = vmul.f32 %v134, %v210
    %v287 = vsel %vm211, %v285, 0
    %289 = vmatprep.subr.mxu0 0.0
    %290 = vmatpush1.msra.mxu0 0.0
    %291 = vmatprep.subr.mxu0 0.0
    %292 = vmatpush1.msra.mxu0 0.0
    %293 = vmatprep.subr.mxu0 0.0
    %294 = vmatpush1.msra.mxu0 0.0
    %295 = vmatprep.subr.mxu0 0.0
    %296 = vmatpush1.msra.mxu0 0.0
    %297 = vmatprep.subr.mxu0 0.0
    %298 = vmatpush1.msra.mxu0 0.0
    %299 = vmatprep.subr.mxu0 0.0
    %300 = vmatpush1.msra.mxu0 0.0
    %301 = vmatprep.subr.mxu0 0.0
    %302 = vmatpush1.msra.mxu0 0.0
    %303 = vmatprep.subr.mxu0 0.0
    %304 = vmatpush1.msra.mxu0 0.0
    %305 = vmatprep.subr.mxu0 0.0
    %306 = vmatpush1.msra.mxu0 0.0
    %307 = vmatprep.subr.mxu0 0.0
    %308 = vmatpush1.msra.mxu0 0.0
    %309 = vmatprep.subr.mxu0 0.0
    %310 = vmatpush1.msra.mxu0 0.0
    %311 = vmatprep.subr.mxu0 0.0
    %312 = vmatpush1.msra.mxu0 0.0
    %313 = vmatprep.subr.mxu0 0.0
    %314 = vmatpush1.msra.mxu0 %v44
    %315 = vmatprep.subr.mxu0 0.0
    %316 = vmatpush1.msra.mxu0 %v43
    %317 = vmatprep.subr.mxu0 0.0
    %318 = vmatpush1.msra.mxu0 %v42
    %319 = vmatprep.subr.mxu0 0.0
    %320 = vmatpush1.msra.mxu0 %v41
    %321 = vmatprep.subr.mxu0 0.0
    %322 = vmatpush2.msra.mxu0 0.0
    %323 = vmatprep.subr.mxu0 0.0
    %324 = vmatpush2.msra.mxu0 0.0
    %325 = vmatprep.subr.mxu0 0.0
    %326 = vmatpush2.msra.mxu0 0.0
    %327 = vmatprep.subr.mxu0 0.0
    %328 = vmatpush2.msra.mxu0 0.0
    %329 = vmatprep.subr.mxu0 0.0
    %330 = vmatpush2.msra.mxu0 0.0
    %331 = vmatprep.subr.mxu0 0.0
    %332 = vmatpush2.msra.mxu0 0.0
    %333 = vmatprep.subr.mxu0 0.0
    %334 = vmatpush2.msra.mxu0 0.0
    %335 = vmatprep.subr.mxu0 0.0
    %336 = vmatpush2.msra.mxu0 0.0
    %337 = vmatprep.subr.mxu0 0.0
    %338 = vmatpush2.msra.mxu0 0.0
    %339 = vmatprep.subr.mxu0 0.0
    %340 = vmatpush2.msra.mxu0 0.0
    %341 = vmatprep.subr.mxu0 0.0
    %342 = vmatpush2.msra.mxu0 0.0
    %343 = vmatprep.subr.mxu0 0.0
    %344 = vmatpush2.msra.mxu0 0.0
    %345 = vmatprep.subr.mxu0 0.0
    %346 = vmatpush2.msra.mxu0 0.0
    %347 = vmatprep.subr.mxu0 0.0
    %348 = vmatpush2.msra.mxu0 0.0
    %349 = vmatprep.subr.mxu0 0.0
    %350 = vmatpush2.msra.mxu0 0.0
    %351 = vmatprep.subr.mxu0 0.0
    %352 = vmatpush2.msra.mxu0 0.0
    %353 = vmatprep.mubr.f32.mxu0 0.0
    %354 = vmatmul.mubr.f32.gmra.mxu0 %v287
    %v355 = vpop.f32.mrf.mxu0
    %v356 = vadd.f32 0.0, %v355
    %v357 = vpop.f32.mrf.mxu0
    %358 = vdwg.mxu0
    %v359 = vmul.f32 %v24, %v282
    %v360 = vsub.f32 %v359, %v356
    %v361 = vlaneseq
    %v362 = vshrl.u32 %v361, 7
    %v363 = vsub.s32 0, %v362
    %v364 = vrot.slane %v62, %v363
    %v365 = vadd.f32 %v360, %v364
    %366 = vmatprep.subr.mxu0 0.0
    %367 = vmatpush1.msra.mxu0 %v60
    %368 = vmatprep.subr.mxu0 0.0
    %369 = vmatpush1.msra.mxu0 %v59
    %370 = vmatprep.subr.mxu0 0.0
    %371 = vmatpush1.msra.mxu0 %v58
    %372 = vmatprep.subr.mxu0 0.0
    %373 = vmatpush1.msra.mxu0 %v57
    %374 = vmatprep.subr.mxu0 0.0
    %375 = vmatpush1.msra.mxu0 %v56
    %376 = vmatprep.subr.mxu0 0.0
    %377 = vmatpush1.msra.mxu0 %v55
    %378 = vmatprep.subr.mxu0 0.0
    %379 = vmatpush1.msra.mxu0 %v54
    %380 = vmatprep.subr.mxu0 0.0
    %381 = vmatpush1.msra.mxu0 %v53
    %382 = vmatprep.subr.mxu0 0.0
    %383 = vmatpush1.msra.mxu0 %v52
    %384 = vmatprep.subr.mxu0 0.0
    %385 = vmatpush1.msra.mxu0 %v51
    %386 = vmatprep.subr.mxu0 0.0
    %387 = vmatpush1.msra.mxu0 %v50
    %388 = vmatprep.subr.mxu0 0.0
    %389 = vmatpush1.msra.mxu0 %v49
    %390 = vmatprep.subr.mxu0 0.0
    %391 = vmatpush1.msra.mxu0 %v48
    %392 = vmatprep.subr.mxu0 0.0
    %393 = vmatpush1.msra.mxu0 %v47
    %394 = vmatprep.subr.mxu0 0.0
    %395 = vmatpush1.msra.mxu0 %v46
    %396 = vmatprep.subr.mxu0 0.0
    %397 = vmatpush1.msra.mxu0 %v45
    %398 = vmatprep.subr.mxu0 0.0
    %399 = vmatpush2.msra.mxu0 0.0
    %400 = vmatprep.subr.mxu0 0.0
    %401 = vmatpush2.msra.mxu0 0.0
    %402 = vmatprep.subr.mxu0 0.0
    %403 = vmatpush2.msra.mxu0 0.0
    %404 = vmatprep.subr.mxu0 0.0
    %405 = vmatpush2.msra.mxu0 0.0
    %406 = vmatprep.subr.mxu0 0.0
    %407 = vmatpush2.msra.mxu0 0.0
    %408 = vmatprep.subr.mxu0 0.0
    %409 = vmatpush2.msra.mxu0 0.0
    %410 = vmatprep.subr.mxu0 0.0
    %411 = vmatpush2.msra.mxu0 0.0
    %412 = vmatprep.subr.mxu0 0.0
    %413 = vmatpush2.msra.mxu0 0.0
    %414 = vmatprep.subr.mxu0 0.0
    %415 = vmatpush2.msra.mxu0 0.0
    %416 = vmatprep.subr.mxu0 0.0
    %417 = vmatpush2.msra.mxu0 0.0
    %418 = vmatprep.subr.mxu0 0.0
    %419 = vmatpush2.msra.mxu0 0.0
    %420 = vmatprep.subr.mxu0 0.0
    %421 = vmatpush2.msra.mxu0 0.0
    %422 = vmatprep.subr.mxu0 0.0
    %423 = vmatpush2.msra.mxu0 0.0
    %424 = vmatprep.subr.mxu0 0.0
    %425 = vmatpush2.msra.mxu0 0.0
    %426 = vmatprep.subr.mxu0 0.0
    %427 = vmatpush2.msra.mxu0 0.0
    %428 = vmatprep.subr.mxu0 0.0
    %429 = vmatpush2.msra.mxu0 0.0
    %430 = vmatprep.mubr.f32.mxu0 0.0
    %431 = vmatmul.mubr.f32.gmra.mxu0 %v365
    %v432 = vpop.f32.mrf.mxu0
    %v433 = vadd.f32 0.0, %v432
    %v434 = vpop.f32.mrf.mxu0
    %435 = vdwg.mxu0
    %v436 = vmul.f32 %v433, 0.03125
    %v437 = vmul.f32 %v365, %v365
    %438 = vmatprep.subr.mxu0 0.0
    %439 = vmatpush1.msra.mxu0 %v60
    %440 = vmatprep.subr.mxu0 0.0
    %441 = vmatpush1.msra.mxu0 %v59
    %442 = vmatprep.subr.mxu0 0.0
    %443 = vmatpush1.msra.mxu0 %v58
    %444 = vmatprep.subr.mxu0 0.0
    %445 = vmatpush1.msra.mxu0 %v57
    %446 = vmatprep.subr.mxu0 0.0
    %447 = vmatpush1.msra.mxu0 %v56
    %448 = vmatprep.subr.mxu0 0.0
    %449 = vmatpush1.msra.mxu0 %v55
    %450 = vmatprep.subr.mxu0 0.0
    %451 = vmatpush1.msra.mxu0 %v54
    %452 = vmatprep.subr.mxu0 0.0
    %453 = vmatpush1.msra.mxu0 %v53
    %454 = vmatprep.subr.mxu0 0.0
    %455 = vmatpush1.msra.mxu0 %v52
    %456 = vmatprep.subr.mxu0 0.0
    %457 = vmatpush1.msra.mxu0 %v51
    %458 = vmatprep.subr.mxu0 0.0
    %459 = vmatpush1.msra.mxu0 %v50
    %460 = vmatprep.subr.mxu0 0.0
    %461 = vmatpush1.msra.mxu0 %v49
    %462 = vmatprep.subr.mxu0 0.0
    %463 = vmatpush1.msra.mxu0 %v48
    %464 = vmatprep.subr.mxu0 0.0
    %465 = vmatpush1.msra.mxu0 %v47
    %466 = vmatprep.subr.mxu0 0.0
    %467 = vmatpush1.msra.mxu0 %v46
    %468 = vmatprep.subr.mxu0 0.0
    %469 = vmatpush1.msra.mxu0 %v45
    %470 = vmatprep.subr.mxu0 0.0
    %471 = vmatpush2.msra.mxu0 0.0
    %472 = vmatprep.subr.mxu0 0.0
    %473 = vmatpush2.msra.mxu0 0.0
    %474 = vmatprep.subr.mxu0 0.0
    %475 = vmatpush2.msra.mxu0 0.0
    %476 = vmatprep.subr.mxu0 0.0
    %477 = vmatpush2.msra.mxu0 0.0
    %478 = vmatprep.subr.mxu0 0.0
    %479 = vmatpush2.msra.mxu0 0.0
    %480 = vmatprep.subr.mxu0 0.0
    %481 = vmatpush2.msra.mxu0 0.0
    %482 = vmatprep.subr.mxu0 0.0
    %483 = vmatpush2.msra.mxu0 0.0
    %484 = vmatprep.subr.mxu0 0.0
    %485 = vmatpush2.msra.mxu0 0.0
    %486 = vmatprep.subr.mxu0 0.0
    %487 = vmatpush2.msra.mxu0 0.0
    %488 = vmatprep.subr.mxu0 0.0
    %489 = vmatpush2.msra.mxu0 0.0
    %490 = vmatprep.subr.mxu0 0.0
    %491 = vmatpush2.msra.mxu0 0.0
    %492 = vmatprep.subr.mxu0 0.0
    %493 = vmatpush2.msra.mxu0 0.0
    %494 = vmatprep.subr.mxu0 0.0
    %495 = vmatpush2.msra.mxu0 0.0
    %496 = vmatprep.subr.mxu0 0.0
    %497 = vmatpush2.msra.mxu0 0.0
    %498 = vmatprep.subr.mxu0 0.0
    %499 = vmatpush2.msra.mxu0 0.0
    %500 = vmatprep.subr.mxu0 0.0
    %501 = vmatpush2.msra.mxu0 0.0
    %502 = vmatprep.mubr.f32.mxu0 0.0
    %503 = vmatmul.mubr.f32.gmra.mxu0 %v437
    %v504 = vpop.f32.mrf.mxu0
    %v505 = vadd.f32 0.0, %v504
    %v506 = vpop.f32.mrf.mxu0
    %507 = vdwg.mxu0
    %v508 = vmul.f32 %v505, 0.03125
    %v509 = vmul.f32 %v436, %v436
    %v510 = vsub.f32 %v508, %v509
    %v511 = vadd.f32 %v510, 1e-05
    %v512 = vrsqrt.pop %v511
    %vm513 = vcmask 31744
    %v515 = vsel %vm513, %v512, 0
    %vm517 = vcmask 1043456
    %v519 = vsel %vm517, %v61, 0
    %521 = vmatprep.subr.mxu0 0.0
    %522 = vmatpush1.msra.mxu0 0.0
    %523 = vmatprep.subr.mxu0 0.0
    %524 = vmatpush1.msra.mxu0 0.0
    %525 = vmatprep.subr.mxu0 0.0
    %526 = vmatpush1.msra.mxu0 0.0
    %527 = vmatprep.subr.mxu0 0.0
    %528 = vmatpush1.msra.mxu0 0.0
    %529 = vmatprep.subr.mxu0 0.0
    %530 = vmatpush1.msra.mxu0 0.0
    %531 = vmatprep.subr.mxu0 0.0
    %532 = vmatpush1.msra.mxu0 0.0
    %533 = vmatprep.subr.mxu0 0.0
    %534 = vmatpush1.msra.mxu0 0.0
    %535 = vmatprep.subr.mxu0 0.0
    %536 = vmatpush1.msra.mxu0 0.0
    %537 = vmatprep.subr.mxu0 0.0
    %538 = vmatpush1.msra.mxu0 0.0
    %539 = vmatprep.subr.mxu0 0.0
    %540 = vmatpush1.msra.mxu0 0.0
    %541 = vmatprep.subr.mxu0 0.0
    %542 = vmatpush1.msra.mxu0 0.0
    %543 = vmatprep.subr.mxu0 0.0
    %544 = vmatpush1.msra.mxu0 0.0
    %545 = vmatprep.subr.mxu0 0.0
    %546 = vmatpush1.msra.mxu0 0.0
    %547 = vmatprep.subr.mxu0 0.0
    %548 = vmatpush1.msra.mxu0 0.0
    %549 = vmatprep.subr.mxu0 0.0
    %550 = vmatpush1.msra.mxu0 0.0
    %551 = vmatprep.subr.mxu0 0.0
    %552 = vmatpush1.msra.mxu0 %v519
    %553 = vmatprep.subr.mxu0 0.0
    %554 = vmatpush2.msra.mxu0 0.0
    %555 = vmatprep.subr.mxu0 0.0
    %556 = vmatpush2.msra.mxu0 0.0
    %557 = vmatprep.subr.mxu0 0.0
    %558 = vmatpush2.msra.mxu0 0.0
    %559 = vmatprep.subr.mxu0 0.0
    %560 = vmatpush2.msra.mxu0 0.0
    %561 = vmatprep.subr.mxu0 0.0
    %562 = vmatpush2.msra.mxu0 0.0
    %563 = vmatprep.subr.mxu0 0.0
    %564 = vmatpush2.msra.mxu0 0.0
    %565 = vmatprep.subr.mxu0 0.0
    %566 = vmatpush2.msra.mxu0 0.0
    %567 = vmatprep.subr.mxu0 0.0
    %568 = vmatpush2.msra.mxu0 0.0
    %569 = vmatprep.subr.mxu0 0.0
    %570 = vmatpush2.msra.mxu0 0.0
    %571 = vmatprep.subr.mxu0 0.0
    %572 = vmatpush2.msra.mxu0 0.0
    %573 = vmatprep.subr.mxu0 0.0
    %574 = vmatpush2.msra.mxu0 0.0
    %575 = vmatprep.subr.mxu0 0.0
    %576 = vmatpush2.msra.mxu0 0.0
    %577 = vmatprep.subr.mxu0 0.0
    %578 = vmatpush2.msra.mxu0 0.0
    %579 = vmatprep.subr.mxu0 0.0
    %580 = vmatpush2.msra.mxu0 0.0
    %581 = vmatprep.subr.mxu0 0.0
    %582 = vmatpush2.msra.mxu0 0.0
    %583 = vmatprep.subr.mxu0 0.0
    %584 = vmatpush2.msra.mxu0 0.0
    %585 = vmatprep.mubr.f32.mxu0 0.0
    %586 = vmatmul.mubr.f32.gmra.mxu0 %v515
    %v587 = vpop.f32.mrf.mxu0
    %v588 = vadd.f32 0.0, %v587
    %v589 = vpop.f32.mrf.mxu0
    %590 = vdwg.mxu0
    %v591 = vmul.f32 %v436, %v512
    %v593 = vsel %vm513, %v591, 0
    %595 = vmatprep.subr.mxu0 0.0
    %596 = vmatpush1.msra.mxu0 0.0
    %597 = vmatprep.subr.mxu0 0.0
    %598 = vmatpush1.msra.mxu0 0.0
    %599 = vmatprep.subr.mxu0 0.0
    %600 = vmatpush1.msra.mxu0 0.0
    %601 = vmatprep.subr.mxu0 0.0
    %602 = vmatpush1.msra.mxu0 0.0
    %603 = vmatprep.subr.mxu0 0.0
    %604 = vmatpush1.msra.mxu0 0.0
    %605 = vmatprep.subr.mxu0 0.0
    %606 = vmatpush1.msra.mxu0 0.0
    %607 = vmatprep.subr.mxu0 0.0
    %608 = vmatpush1.msra.mxu0 0.0
    %609 = vmatprep.subr.mxu0 0.0
    %610 = vmatpush1.msra.mxu0 0.0
    %611 = vmatprep.subr.mxu0 0.0
    %612 = vmatpush1.msra.mxu0 0.0
    %613 = vmatprep.subr.mxu0 0.0
    %614 = vmatpush1.msra.mxu0 0.0
    %615 = vmatprep.subr.mxu0 0.0
    %616 = vmatpush1.msra.mxu0 0.0
    %617 = vmatprep.subr.mxu0 0.0
    %618 = vmatpush1.msra.mxu0 0.0
    %619 = vmatprep.subr.mxu0 0.0
    %620 = vmatpush1.msra.mxu0 0.0
    %621 = vmatprep.subr.mxu0 0.0
    %622 = vmatpush1.msra.mxu0 0.0
    %623 = vmatprep.subr.mxu0 0.0
    %624 = vmatpush1.msra.mxu0 0.0
    %625 = vmatprep.subr.mxu0 0.0
    %626 = vmatpush1.msra.mxu0 %v519
    %627 = vmatprep.subr.mxu0 0.0
    %628 = vmatpush2.msra.mxu0 0.0
    %629 = vmatprep.subr.mxu0 0.0
    %630 = vmatpush2.msra.mxu0 0.0
    %631 = vmatprep.subr.mxu0 0.0
    %632 = vmatpush2.msra.mxu0 0.0
    %633 = vmatprep.subr.mxu0 0.0
    %634 = vmatpush2.msra.mxu0 0.0
    %635 = vmatprep.subr.mxu0 0.0
    %636 = vmatpush2.msra.mxu0 0.0
    %637 = vmatprep.subr.mxu0 0.0
    %638 = vmatpush2.msra.mxu0 0.0
    %639 = vmatprep.subr.mxu0 0.0
    %640 = vmatpush2.msra.mxu0 0.0
    %641 = vmatprep.subr.mxu0 0.0
    %642 = vmatpush2.msra.mxu0 0.0
    %643 = vmatprep.subr.mxu0 0.0
    %644 = vmatpush2.msra.mxu0 0.0
    %645 = vmatprep.subr.mxu0 0.0
    %646 = vmatpush2.msra.mxu0 0.0
    %647 = vmatprep.subr.mxu0 0.0
    %648 = vmatpush2.msra.mxu0 0.0
    %649 = vmatprep.subr.mxu0 0.0
    %650 = vmatpush2.msra.mxu0 0.0
    %651 = vmatprep.subr.mxu0 0.0
    %652 = vmatpush2.msra.mxu0 0.0
    %653 = vmatprep.subr.mxu0 0.0
    %654 = vmatpush2.msra.mxu0 0.0
    %655 = vmatprep.subr.mxu0 0.0
    %656 = vmatpush2.msra.mxu0 0.0
    %657 = vmatprep.subr.mxu0 0.0
    %658 = vmatpush2.msra.mxu0 0.0
    %659 = vmatprep.mubr.f32.mxu0 0.0
    %660 = vmatmul.mubr.f32.gmra.mxu0 %v593
    %v661 = vpop.f32.mrf.mxu0
    %v662 = vadd.f32 0.0, %v661
    %v663 = vpop.f32.mrf.mxu0
    %664 = vdwg.mxu0
    %v665 = vmul.f32 %v365, %v588
    %v666 = vsub.f32 %v665, %v662
    %v667 = vlaneseq
    %v668 = vshrl.u32 %v667, 7
    %v669 = vsub.s32 0, %v668
    %v670 = vrot.slane %v63, %v669
    %v671 = vadd.f32 %v666, %v670
    %672 = vst [vmem:[#allocation2] sm:$0xff] %v671
    // Predicated region
    $region26: #{tpu_custom_call.1} parent=1 // pred_check
      _
    $region27: #{tpu_custom_call.1} parent=1 // pred_check_branch
      %674 = sbr.rel (0) target = $region29
    $region28: #{tpu_custom_call.1} parent=1 // pred_region
      %s676 = ssub.s32 128, 128
      %677 = vsyncadd [#allocation3], %s676
      %s679 = sshll.u32 [#allocation2], 4
      %s680 = int_to_ptr.vmem [resolvable:$true] %s679
      %682 = dma.vmem_to_hbm [thread:$0]  %s680, 128, %s6, [#allocation3]
    $region29: #{tpu_custom_call.1} parent=1 // pred_fallthru
      _
    // Predicated region
    $region30: #{tpu_custom_call.1} parent=1 // pred_check
      _
    $region31: #{tpu_custom_call.1} parent=1 // pred_check_branch
      %684 = sbr.rel (0) target = $region33
    $region32: #{tpu_custom_call.1} parent=1 // pred_region
      %685 = dma.done [#allocation3], 128
    $region33: #{tpu_custom_call.1} parent=1 // pred_fallthru
      _
    %686 = vsyncpa [#allocation3], 1

</llo_original>
